<compile_context>
chip_gen: v5e
topology: v5e:2x2
jax: 0.10.0
libtpu: 0.0.40
codegen_flags: <defaults>
</compile_context>

<pallas_src>
import jax
import jax.numpy as jnp
from jax.experimental import pallas as pl
from jax.experimental.pallas import tpu as pltpu


def _hsigmoid_kernel(x_ref, o_ref):
    x = x_ref[...]
    y = jnp.clip(x + 3.0, 0.0, 6.0) * (1.0 / 6.0)
    o_ref[...] = y.astype(o_ref.dtype)


def _vmem_capacity_bytes() -> int:
    """Queried VMEM capacity; conservative v7x per-TC fallback (64 MiB)."""
    try:
        info = pltpu.get_tpu_info()
        cap = getattr(info, "vmem_capacity_bytes", None)
        if cap:
            return int(cap)
    except Exception:
        pass
    return 64 << 20


def _pick_block_rows(rows, width, itemsize, sublane, target_block_bytes):
    bytes_per_row = width * itemsize
    br = (target_block_bytes // bytes_per_row) // sublane * sublane
    br = max(br, sublane)
    if br < rows:
        return br
    # Whole tensor would fit in one block.  If it's big enough that streaming
    # matters, split into >= 2 blocks so both v7x TensorCores get a program.
    total_bytes = rows * bytes_per_row
    if total_bytes > (4 << 20) and rows >= 2 * sublane:
        half = -(-rows // 2)                      # ceil(rows / 2)
        br = -(-half // sublane) * sublane        # round up to sublane multiple
        return min(br, rows)
    return rows


def _run_2d(x2d, block_rows, vmem_limit_bytes):
    rows, width = x2d.shape
    grid = (pl.cdiv(rows, block_rows),)
    return pl.pallas_call(
        _hsigmoid_kernel,
        out_shape=jax.ShapeDtypeStruct((rows, width), x2d.dtype),
        grid=grid,
        in_specs=[pl.BlockSpec((block_rows, width), lambda i: (i, 0))],
        out_specs=pl.BlockSpec((block_rows, width), lambda i: (i, 0)),
        compiler_params=pltpu.CompilerParams(
            dimension_semantics=("parallel",),
            vmem_limit_bytes=vmem_limit_bytes,
        ),
    )(x2d)


def hsigmoid(x: jax.Array) -> jax.Array:
    """Elementwise hard-sigmoid matching F.relu6(x + 3) / 6."""
    orig_shape = x.shape
    dtype = x.dtype
    n = x.size
    if n == 0:
        return x
    itemsize = jnp.dtype(dtype).itemsize
    sublane = {4: 8, 2: 16, 1: 32}.get(itemsize, 8)

    vmem_cap = _vmem_capacity_bytes()
    # Residency = 4x block bytes (in + out, double-buffered); keep it well
    # under the physical VMEM of the smallest target (v7x: 64 MiB).
    target_block_bytes = min(8 << 20, max(1 << 20, vmem_cap // 8))
    vmem_limit_bytes = int(min(48 << 20, (3 * vmem_cap) // 4))

    flat = x.reshape(-1)
    n_main = (n // 128) * 128

    pieces = []
    if n_main:
        width = 128
        for cand in (1024, 512, 256):
            if n_main % cand == 0:
                width = cand
                break
        rows = n_main // width
        block_rows = _pick_block_rows(
            rows, width, itemsize, sublane, target_block_bytes)
        main_out = _run_2d(
            flat[:n_main].reshape(rows, width), block_rows, vmem_limit_bytes)
        pieces.append(main_out.reshape(-1))

    if n_main < n:
        # <128-element tail: plain jnp (avoids the old whole-tensor pad+slice
        # extra HBM passes; the stitch below only touches the tiny tail plus
        # one rewrite of the main output).
        # TODO(synk): a BoundedSlice edge block could remove the concat copy,
        # but non-128-divisible activation tensors are uncommon.
        tail = flat[n_main:]
        tail_out = (jnp.clip(tail + 3.0, 0.0, 6.0) * (1.0 / 6.0)).astype(dtype)
        pieces.append(tail_out)

    out_flat = pieces[0] if len(pieces) == 1 else jnp.concatenate(pieces)
    return out_flat.reshape(orig_shape)


if __name__ == "__main__":
    key = jax.random.PRNGKey(0)
    # NCHW, small shape consistent with a conv-backbone activation.
    x = jax.random.normal(key, (2, 4, 16, 16), dtype=jnp.float32) * 4.0

    y = hsigmoid(x)
    y = jax.block_until_ready(y)

    # Reference check in plain JAX.
    y_ref = jnp.clip(x + 3.0, 0.0, 6.0) / 6.0
    assert y.shape == x.shape and y.dtype == x.dtype
    assert jnp.max(jnp.abs(y - y_ref)) < 1e-6

    print("KERNEL_OK")
</pallas_src>

<mosaic_0001>
module attributes {stable_mosaic.version = 11 : i64} {
  func.func @_hsigmoid_kernel(%arg0: i32, %arg1: memref<2x1024xf32, #tpu.memory_space<vmem>>, %arg2: memref<2x1024xf32, #tpu.memory_space<vmem>>) attributes {dimension_semantics = [#tpu.dimension_semantics<parallel>], iteration_bounds = array<i64: 1>, scalar_prefetch = 0 : i64, scratch_operands = 0 : i64, tpu.core_type = #tpu.core_type<tc>, window_params = [{transform_indices = @transform_0, window_bounds = array<i64: 2, 1024>}, {transform_indices = @transform_1, window_bounds = array<i64: 2, 1024>}]} {
    %c0 = arith.constant 0 : index
    %c0_0 = arith.constant 0 : index
    %0 = vector.load %arg1[%c0, %c0_0] : memref<2x1024xf32, #tpu.memory_space<vmem>>, vector<2x1024xf32>
    %cst = arith.constant 3.000000e+00 : f32
    %1 = vector.broadcast %cst : f32 to vector<2x1024xf32>
    %2 = arith.addf %0, %1 : vector<2x1024xf32>
    %cst_1 = arith.constant 0.000000e+00 : f32
    %cst_2 = arith.constant 6.000000e+00 : f32
    %3 = vector.broadcast %cst_1 : f32 to vector<2x1024xf32>
    %4 = arith.maximumf %3, %2 : vector<2x1024xf32>
    %5 = vector.broadcast %cst_2 : f32 to vector<2x1024xf32>
    %6 = arith.minimumf %5, %4 : vector<2x1024xf32>
    %cst_3 = arith.constant 0.166666672 : f32
    %7 = vector.broadcast %cst_3 : f32 to vector<2x1024xf32>
    %8 = arith.mulf %6, %7 : vector<2x1024xf32>
    %c0_4 = arith.constant 0 : index
    %c0_5 = arith.constant 0 : index
    %9 = vector.load %arg2[%c0_4, %c0_5] : memref<2x1024xf32, #tpu.memory_space<vmem>>, vector<2x1024xf32>
    tpu.vector_store %arg2[%c0_4, %c0_5], %8 {strides = array<i32>} : memref<2x1024xf32, #tpu.memory_space<vmem>>, vector<2x1024xf32>,
    return
  }
  func.func @transform_0(%arg0: i32) -> (i32, i32) {
    %c0_i32 = arith.constant 0 : i32
    %c0_i32_0 = arith.constant 0 : i32
    return %arg0, %c0_i32 : i32, i32
  }
  func.func @transform_1(%arg0: i32) -> (i32, i32) {
    %c0_i32 = arith.constant 0 : i32
    %c0_i32_0 = arith.constant 0 : i32
    return %arg0, %c0_i32 : i32, i32
  }
}

</mosaic_0001>

<llo_original>
// kernel: tpu_custom_call.1
$region0: #{tpu_custom_call.1}
  #allocation0 [shape = 'u32[]', space=smem, size = 0x4, offset = 0x4, fixed_abs, tag = 'smem constant byte address 0x4 - core index']
  #allocation1 [shape = 'u32[72,128]{1,0:T(1,128)}', space=vmem, size = 0x9000, scoped, tag = 'internal scratch']
  %s0 = inlined_call_operand.hbm [shape: f32[2,1024], index: 0, kind: input, shape index: {}]
  %s1 = inlined_call_operand.hbm [shape: f32[2,1024], index: 1, kind: output, shape index: {}]
  %s2 = sld [smem:[#allocation0]]
  $region18: #{tpu_custom_call.1} parent=0
    _
  %s4 = ssub.s32 1, %s2
  %s5 = scalar_select 0, %s4, %s2
  $region1: #{tpu_custom_call.1} parent=0
    #allocation2 [shape = 'u8[8192]{0}', space=vmem, size = 0x2000, scoped, tag = 'input window, operand 0, single buffered']
    #allocation3 [shape = 's32[1]{0}', space=sflag, size = 0x4, scoped, tag = 'scoped memory for tpu_custom_call.1']
    #allocation4 [shape = 's32[1]{0}', space=sflag, size = 0x4, scoped, tag = 'scoped memory for tpu_custom_call.1']
    #allocation5 [shape = 'u8[8192]{0}', space=vmem, size = 0x2000, scoped, tag = 'output window, operand 0, single buffered']
    %6 = vsyncpa [#allocation3], 0
    %7 = vsyncpa [#allocation4], 0
    // Predicated region
    $region2: #{tpu_custom_call.1} parent=1 // pred_check
      _
    $region3: #{tpu_custom_call.1} parent=1 // pred_check_branch
      %9 = sbr.rel (0) target = $region5
    $region4: #{tpu_custom_call.1} parent=1 // pred_region
      %11 = vsyncadd [#allocation3], 0
      %s13 = sshll.u32 %s0, 4
      %s14 = int_to_ptr.hbm [resolvable:$true] %s13
      %s15 = sshll.u32 [#allocation2], 4
      %s16 = int_to_ptr.vmem [resolvable:$true] %s15
      %18 = dma.hbm_to_vmem [thread:$0]  %s14, 256, %s16, [#allocation3]
    $region5: #{tpu_custom_call.1} parent=1 // pred_fallthru
      _
    // Predicated region
    $region6: #{tpu_custom_call.1} parent=1 // pred_check
      _
    $region7: #{tpu_custom_call.1} parent=1 // pred_check_branch
      %20 = sbr.rel (0) target = $region9
    $region8: #{tpu_custom_call.1} parent=1 // pred_region
      %22 = dma.done [#allocation3], 256
    $region9: #{tpu_custom_call.1} parent=1 // pred_fallthru
      _
    %v23 = vld [vmem:[#allocation2] sm:$0xff]
    %v24 = vld [vmem:[#allocation2 + $0x8] sm:$0xff]
    %v25 = vadd.f32 %v23, 3.0
    %v26 = vadd.f32 %v24, 3.0
    %v27 = vmax.f32 %v25, 0.0
    %v28 = vmax.f32 %v26, 0.0
    %v29 = vmin.f32 %v27, 6.0
    %v30 = vmin.f32 %v28, 6.0
    %v31 = vmul.f32 %v29, 0.16666667
    %v32 = vmul.f32 %v30, 0.16666667
    %33 = vst [vmem:[#allocation5] sm:$0xff] %v31
    %34 = vst [vmem:[#allocation5 + $0x8] sm:$0xff] %v32
    // Predicated region
    $region10: #{tpu_custom_call.1} parent=1 // pred_check
      _
    $region11: #{tpu_custom_call.1} parent=1 // pred_check_branch
      %36 = sbr.rel (0) target = $region13
    $region12: #{tpu_custom_call.1} parent=1 // pred_region
      %38 = vsyncadd [#allocation4], 0
      %s40 = sshll.u32 [#allocation5], 4
      %s41 = int_to_ptr.vmem [resolvable:$true] %s40
      %s42 = sshll.u32 %s1, 4
      %s43 = int_to_ptr.hbm [resolvable:$true] %s42
      %45 = dma.vmem_to_hbm [thread:$0]  %s41, 256, %s43, [#allocation4]
    $region13: #{tpu_custom_call.1} parent=1 // pred_fallthru
      _
    // Predicated region
    $region14: #{tpu_custom_call.1} parent=1 // pred_check
      _
    $region15: #{tpu_custom_call.1} parent=1 // pred_check_branch
      %47 = sbr.rel (0) target = $region17
    $region16: #{tpu_custom_call.1} parent=1 // pred_region
      %49 = dma.done [#allocation4], 256
    $region17: #{tpu_custom_call.1} parent=1 // pred_fallthru
      _
    %50 = vsyncpa [#allocation3], 1
    %51 = vsyncpa [#allocation4], 1

</llo_original>
